<compile_context>
chip_gen: v7x
topology: tpu7x:2x2x1
jax: 0.10.0
libtpu: 0.0.40
codegen_flags: <defaults>
</compile_context>

<pallas_src>
import functools

import jax
import jax.numpy as jnp
from jax.experimental import pallas as pl
from jax.experimental.pallas import tpu as pltpu


# Packed per-channel parameter columns (C_out, 4).
_BN_BIAS, _PRELU_A, _W_SP, _B_SP = 0, 1, 2, 3


def _conv_bn_prelu(x, wc_ref, cpar_ref):
    """y[o, s] = PReLU(sum_c wc_bn[o, c] * x[c, s] + bn_bias[o]) via VPU broadcast-FMAs."""
    c_in = wc_ref.shape[1]
    t = wc_ref[:, 0:1] * x[0:1, :]                       # (C_out,1)*(1,TS) -> (C_out,TS)
    for c in range(1, c_in):                             # static unroll, C_in is tiny
        t = t + wc_ref[:, c:c + 1] * x[c:c + 1, :]
    y = t + cpar_ref[:, _BN_BIAS:_BN_BIAS + 1]           # folded BN bias
    return jnp.where(y >= 0.0, y, cpar_ref[:, _PRELU_A:_PRELU_A + 1] * y)


def _pool_kernel(x_ref, wc_ref, cpar_ref, sums_ref, *, s_valid, needs_mask):
    """Pass 1: partial channel sums of y over this (sample, S-split)'s tiles."""
    sp = pl.program_id(1)
    t = pl.program_id(2)
    ts = x_ref.shape[2]

    @pl.when(t == 0)
    def _():
        sums_ref[...] = jnp.zeros_like(sums_ref)

    x = x_ref[0].astype(jnp.float32)                     # bf16-storage safe
    y = _conv_bn_prelu(x, wc_ref, cpar_ref)              # (C_out, TS)

    if needs_mask:  # ragged last tile: zero the undefined lanes so the mean is exact
        col0 = (sp * pl.num_programs(2) + t) * ts
        col = jax.lax.broadcasted_iota(jnp.int32, y.shape, 1) + col0
        y = jnp.where(col < s_valid, y, 0.0)

    sums_ref[0, 0] += jnp.sum(y, axis=1, keepdims=True)  # (C_out, 1) running sums


def _apply_kernel(x_ref, wc_ref, cpar_ref, gate_ref, o_ref):
    """Pass 2: recompute y per tile, apply spatial + channel SE gates (no lane reductions)."""
    x = x_ref[0].astype(jnp.float32)
    y = _conv_bn_prelu(x, wc_ref, cpar_ref)                                      # (C_out, TS)
    s_pre = (jnp.sum(cpar_ref[:, _W_SP:_W_SP + 1] * y, axis=0, keepdims=True)
             + cpar_ref[0:1, _B_SP:_B_SP + 1])                                   # (1, TS)
    gates = jax.nn.sigmoid(s_pre) + gate_ref[0]                                  # (C_out, TS)
    o_ref[0] = (y * y * gates).astype(o_ref.dtype)


def wblock_pallas(x_ncdhw, params, *, max_tile=32768, storage_dtype=jnp.float32):
    """x_ncdhw: (N, C_in, D, H, W). Returns (N, C_out, D, H, W) in storage_dtype."""
    N, C_in, D, H, W = x_ncdhw.shape
    S = D * H * W
    C_out, C_red = params["w2"].shape

    # Channel-major layout: NCDHW -> (N, C, S) is a pure reshape (no transpose, no pad).
    x = x_ncdhw.reshape(N, C_in, S).astype(storage_dtype)

    # Lane-dense spatial tile (multiple of 128); ragged last tile handled in-kernel.
    TS = min(max_tile, pl.cdiv(S, 128) * 128)
    n_tiles = pl.cdiv(S, TS)
    needs_mask = (S % TS) != 0

    # Split pass 1's S axis into 2 parallel halves when possible (v7x megacore at N=1).
    splits = 2 if (n_tiles >= 2 and n_tiles % 2 == 0) else 1
    tps = n_tiles // splits

    # Fold eval-mode BN scale into the conv weight; pack per-channel vectors.
    wc_bn = params["wc"] * params["bn_scale"][:, None]                            # (C_out, C_in)
    cpar = jnp.stack(
        [params["bn_bias"], params["prelu_a"], params["w_sp"],
         jnp.broadcast_to(params["b_sp"], (C_out,))], axis=1)                     # (C_out, 4)

    cparams = lambda sems: pltpu.CompilerParams(
        dimension_semantics=sems, vmem_limit_bytes=32 * 1024 * 1024)

    # ---- Pass 1: partial channel sums of y (accumulated in the resident output block) ----
    sums = pl.pallas_call(
        functools.partial(_pool_kernel, s_valid=S, needs_mask=needs_mask),
        out_shape=jax.ShapeDtypeStruct((N, splits, C_out, 1), jnp.float32),
        grid_spec=pltpu.PrefetchScalarGridSpec(
            num_scalar_prefetch=0,
            grid=(N, splits, tps),
            in_specs=[
                pl.BlockSpec((1, C_in, TS), lambda n, sp, t: (n, 0, sp * tps + t)),
                pl.BlockSpec((C_out, C_in), lambda n, sp, t: (0, 0)),
                pl.BlockSpec((C_out, 4), lambda n, sp, t: (0, 0)),
            ],
            out_specs=pl.BlockSpec((1, 1, C_out, 1), lambda n, sp, t: (n, sp, 0, 0)),
        ),
        compiler_params=cparams(("parallel", "parallel", "arbitrary")),
    )(x, wc_bn, cpar)

    # ---- Tiny SE-MLP finalize (needs the full-S mean): one ~100-flop XLA op, f32 ----
    z = jnp.sum(sums[:, :, :, 0], axis=1) * (1.0 / S)                             # (N, C_out)
    h = jnp.maximum(z @ params["w1"].T + params["b1"], 0.0)                       # (N, C_red)
    gate = jax.nn.sigmoid(h @ params["w2"].T + params["b2"])[:, :, None]          # (N, C_out, 1)
    gate = gate.astype(jnp.float32)

    # ---- Pass 2: apply gates; output tile is lane-dense (last dim = TS, 128-multiple) ----
    out = pl.pallas_call(
        _apply_kernel,
        out_shape=jax.ShapeDtypeStruct((N, C_out, S), storage_dtype),
        grid_spec=pltpu.PrefetchScalarGridSpec(
            num_scalar_prefetch=0,
            grid=(N, n_tiles),
            in_specs=[
                pl.BlockSpec((1, C_in, TS), lambda n, t: (n, 0, t)),
                pl.BlockSpec((C_out, C_in), lambda n, t: (0, 0)),
                pl.BlockSpec((C_out, 4), lambda n, t: (0, 0)),
                pl.BlockSpec((1, C_out, 1), lambda n, t: (n, 0, 0)),
            ],
            out_specs=pl.BlockSpec((1, C_out, TS), lambda n, t: (n, 0, t)),
        ),
        compiler_params=cparams(("parallel", "parallel")),
    )(x, wc_bn, cpar, gate)

    return out.reshape(N, C_out, D, H, W)


def make_params(key, C_in, C_out):
    """Parameters in PyTorch-native orientation (eval-mode BN stats folded)."""
    C_red = C_out // 2                      # ChannelSELayer3D reduction_ratio=2
    ks = jax.random.split(key, 9)
    eps = 1e-3                              # BatchNorm3d eps used in CBR

    wc = 0.1 * jax.random.normal(ks[0], (C_out, C_in), jnp.float32)   # Conv3d(nIn,nOut,1), no bias
    gamma = 1.0 + 0.1 * jax.random.normal(ks[1], (C_out,), jnp.float32)
    beta = 0.1 * jax.random.normal(ks[2], (C_out,), jnp.float32)
    running_mean = jnp.zeros((C_out,), jnp.float32)
    running_var = jnp.ones((C_out,), jnp.float32)
    bn_scale = gamma * jax.lax.rsqrt(running_var + eps)
    bn_bias = beta - running_mean * bn_scale
    prelu_a = jnp.full((C_out,), 0.25, jnp.float32)                   # PReLU default init

    w_sp = 0.1 * jax.random.normal(ks[3], (C_out,), jnp.float32)      # Conv3d(nOut,1,1) weight
    b_sp = 0.1 * jax.random.normal(ks[4], (), jnp.float32)            # and its bias

    w1 = 0.1 * jax.random.normal(ks[5], (C_red, C_out), jnp.float32)  # fc1.weight
    b1 = 0.1 * jax.random.normal(ks[6], (C_red,), jnp.float32)
    w2 = 0.1 * jax.random.normal(ks[7], (C_out, C_red), jnp.float32)  # fc2.weight
    b2 = 0.1 * jax.random.normal(ks[8], (C_out,), jnp.float32)

    return dict(wc=wc, bn_scale=bn_scale, bn_bias=bn_bias, prelu_a=prelu_a,
                w_sp=w_sp, b_sp=b_sp, w1=w1, b1=b1, w2=w2, b2=b2)


def wblock_reference(x_ncdhw, params):
    """Pure-JAX reference of the same forward pass (for correctness check)."""
    N, C_in, D, H, W = x_ncdhw.shape
    S = D * H * W
    xc = x_ncdhw.reshape(N, C_in, S)
    y = jnp.einsum("oc,ncs->nos", params["wc"], xc)                            # (N, Cout, S)
    y = y * params["bn_scale"][None, :, None] + params["bn_bias"][None, :, None]
    y = jnp.where(y >= 0, y, params["prelu_a"][None, :, None] * y)
    s_gate = jax.nn.sigmoid(jnp.einsum("o,nos->ns", params["w_sp"], y) + params["b_sp"])
    z = jnp.mean(y, axis=2)                                                    # (N, Cout)
    h = jnp.maximum(z @ params["w1"].T + params["b1"], 0.0)                    # (N, Cred)
    c_gate = jax.nn.sigmoid(h @ params["w2"].T + params["b2"])                 # (N, Cout)
    out = y * y * (s_gate[:, None, :] + c_gate[:, :, None])
    return out.reshape(N, -1, D, H, W)


if __name__ == "__main__":
    key = jax.random.PRNGKey(0)
    kx, kp, kx2 = jax.random.split(key, 3)

    N, C_in, C_out = 2, 4, 8
    D = H = W = 8                 # S = 512 voxels per sample (single lane-dense tile)

    x = jax.random.normal(kx, (N, C_in, D, H, W), jnp.float32)
    params = make_params(kp, C_in, C_out)
    ref = wblock_reference(x, params)

    # 1) f32 storage (exact path).
    out = jax.block_until_ready(wblock_pallas(x, params))
    assert out.shape == (N, C_out, D, H, W)
    err = float(jnp.max(jnp.abs(out - ref)))
    assert err < 1e-4, f"f32 mismatch vs JAX reference: {err}"

    # 2) bf16 HBM storage (mem-bound win on v6e/v7x/v5e); compare against the
    #    reference fed the bf16-quantized input, so only in-kernel rounding remains.
    x_q = x.astype(jnp.bfloat16).astype(jnp.float32)
    ref_bf = wblock_reference(x_q, params)
    out_bf = jax.block_until_ready(
        wblock_pallas(x, params, storage_dtype=jnp.bfloat16)).astype(jnp.float32)
    err_bf = float(jnp.max(jnp.abs(out_bf - ref_bf)))
    assert err_bf < 2e-2, f"bf16-storage mismatch vs JAX reference: {err_bf}"

    # 3) Ragged S (S=704, not a multiple of 128), multi-tile grid, split-S pass 1,
    #    N=1 — exercises the no-pad/no-slice boundary handling and the parallel split.
    D2, H2, W2 = 8, 8, 11
    x2 = jax.random.normal(kx2, (1, C_in, D2, H2, W2), jnp.float32)
    out2 = jax.block_until_ready(wblock_pallas(x2, params, max_tile=128))
    ref2 = wblock_reference(x2, params)
    assert out2.shape == (1, C_out, D2, H2, W2)
    err2 = float(jnp.max(jnp.abs(out2 - ref2)))
    assert err2 < 1e-4, f"ragged/multi-tile mismatch vs JAX reference: {err2}"

    print("KERNEL_OK")
</pallas_src>

<mosaic_0001>
module attributes {stable_mosaic.version = 11 : i64} {
  func.func @_pool_kernel(%arg0: i32, %arg1: i32, %arg2: i32, %arg3: memref<1x4x512xf32, #tpu.memory_space<vmem>>, %arg4: memref<8x4xf32, #tpu.memory_space<vmem>>, %arg5: memref<8x4xf32, #tpu.memory_space<vmem>>, %arg6: memref<1x1x8x1xf32, #tpu.memory_space<vmem>>) attributes {dimension_semantics = [#tpu.dimension_semantics<parallel>, #tpu.dimension_semantics<parallel>, #tpu.dimension_semantics<arbitrary>], iteration_bounds = array<i64: 2, 1, 1>, scalar_prefetch = 0 : i64, scratch_operands = 0 : i64, tpu.core_type = #tpu.core_type<tc>, window_params = [{transform_indices = @transform_0, window_bounds = array<i64: 1, 4, 512>}, {pipeline_mode = #tpu.pipeline_mode<synchronous>, transform_indices = @transform_1, window_bounds = array<i64: 8, 4>}, {pipeline_mode = #tpu.pipeline_mode<synchronous>, transform_indices = @transform_2, window_bounds = array<i64: 8, 4>}, {transform_indices = @transform_3, window_bounds = array<i64: 1, 1, 8, 1>}]} {
    %c0_i32 = arith.constant 0 : i32
    %0 = arith.cmpi eq, %arg2, %c0_i32 : i32
    %1 = arith.extui %0 : i1 to i32
    %c0_i32_0 = arith.constant 0 : i32
    %2 = arith.cmpi ne, %1, %c0_i32_0 : i32
    scf.if %2 {
      %cst_21 = arith.constant 0.000000e+00 : f32
      %45 = vector.broadcast %cst_21 : f32 to vector<1x1x8x1xf32>
      %c0_22 = arith.constant 0 : index
      %c0_23 = arith.constant 0 : index
      %c0_24 = arith.constant 0 : index
      %c0_25 = arith.constant 0 : index
      %46 = vector.load %arg6[%c0_22, %c0_23, %c0_24, %c0_25] : memref<1x1x8x1xf32, #tpu.memory_space<vmem>>, vector<1x1x8x1xf32>
      tpu.vector_store %arg6[%c0_22, %c0_23, %c0_24, %c0_25], %45 {strides = array<i32>} : memref<1x1x8x1xf32, #tpu.memory_space<vmem>>, vector<1x1x8x1xf32>,
    } else {
    }
    %c0 = arith.constant 0 : index
    %c0_1 = arith.constant 0 : index
    %c0_2 = arith.constant 0 : index
    %3 = vector.load %arg3[%c0, %c0_1, %c0_2] : memref<1x4x512xf32, #tpu.memory_space<vmem>>, vector<1x4x512xf32>
    %4 = vector.shape_cast %3 : vector<1x4x512xf32> to vector<4x512xf32>
    %c0_3 = arith.constant 0 : index
    %c0_4 = arith.constant 0 : index
    %5 = vector.load %arg4[%c0_3, %c0_4] : memref<8x4xf32, #tpu.memory_space<vmem>>, vector<8x1xf32>
    %6 = vector.extract_strided_slice %4 {offsets = [0, 0], sizes = [1, 512], strides = [1, 1]} : vector<4x512xf32> to vector<1x512xf32>
    %7 = vector.broadcast %5 : vector<8x1xf32> to vector<8x512xf32>
    %8 = vector.broadcast %6 : vector<1x512xf32> to vector<8x512xf32>
    %9 = arith.mulf %7, %8 : vector<8x512xf32>
    %c0_5 = arith.constant 0 : index
    %c1 = arith.constant 1 : index
    %10 = vector.load %arg4[%c0_5, %c1] : memref<8x4xf32, #tpu.memory_space<vmem>>, vector<8x1xf32>
    %11 = vector.extract_strided_slice %4 {offsets = [1, 0], sizes = [1, 512], strides = [1, 1]} : vector<4x512xf32> to vector<1x512xf32>
    %12 = vector.broadcast %10 : vector<8x1xf32> to vector<8x512xf32>
    %13 = vector.broadcast %11 : vector<1x512xf32> to vector<8x512xf32>
    %14 = arith.mulf %12, %13 : vector<8x512xf32>
    %15 = arith.addf %9, %14 : vector<8x512xf32>
    %c0_6 = arith.constant 0 : index
    %c2 = arith.constant 2 : index
    %16 = vector.load %arg4[%c0_6, %c2] : memref<8x4xf32, #tpu.memory_space<vmem>>, vector<8x1xf32>
    %17 = vector.extract_strided_slice %4 {offsets = [2, 0], sizes = [1, 512], strides = [1, 1]} : vector<4x512xf32> to vector<1x512xf32>
    %18 = vector.broadcast %16 : vector<8x1xf32> to vector<8x512xf32>
    %19 = vector.broadcast %17 : vector<1x512xf32> to vector<8x512xf32>
    %20 = arith.mulf %18, %19 : vector<8x512xf32>
    %21 = arith.addf %15, %20 : vector<8x512xf32>
    %c0_7 = arith.constant 0 : index
    %c3 = arith.constant 3 : index
    %22 = vector.load %arg4[%c0_7, %c3] : memref<8x4xf32, #tpu.memory_space<vmem>>, vector<8x1xf32>
    %23 = vector.extract_strided_slice %4 {offsets = [3, 0], sizes = [1, 512], strides = [1, 1]} : vector<4x512xf32> to vector<1x512xf32>
    %24 = vector.broadcast %22 : vector<8x1xf32> to vector<8x512xf32>
    %25 = vector.broadcast %23 : vector<1x512xf32> to vector<8x512xf32>
    %26 = arith.mulf %24, %25 : vector<8x512xf32>
    %27 = arith.addf %21, %26 : vector<8x512xf32>
    %c0_8 = arith.constant 0 : index
    %c0_9 = arith.constant 0 : index
    %28 = vector.load %arg5[%c0_8, %c0_9] : memref<8x4xf32, #tpu.memory_space<vmem>>, vector<8x1xf32>
    %29 = vector.broadcast %28 : vector<8x1xf32> to vector<8x512xf32>
    %30 = arith.addf %27, %29 : vector<8x512xf32>
    %cst = arith.constant 0.000000e+00 : f32
    %31 = vector.broadcast %cst : f32 to vector<8x512xf32>
    %32 = arith.cmpf oge, %30, %31 : vector<8x512xf32>
    %c0_10 = arith.constant 0 : index
    %c1_11 = arith.constant 1 : index
    %33 = vector.load %arg5[%c0_10, %c1_11] : memref<8x4xf32, #tpu.memory_space<vmem>>, vector<8x1xf32>
    %34 = vector.broadcast %33 : vector<8x1xf32> to vector<8x512xf32>
    %35 = arith.mulf %34, %30 : vector<8x512xf32>
    %36 = arith.select %32, %30, %35 : vector<8x512xi1>, vector<8x512xf32>
    %c0_12 = arith.constant 0 : index
    %c0_13 = arith.constant 0 : index
    %c0_14 = arith.constant 0 : index
    %c0_15 = arith.constant 0 : index
    %37 = vector.load %arg6[%c0_12, %c0_13, %c0_14, %c0_15] : memref<1x1x8x1xf32, #tpu.memory_space<vmem>>, vector<1x1x8x1xf32>
    %38 = vector.shape_cast %37 : vector<1x1x8x1xf32> to vector<8x1xf32>
    %cst_16 = arith.constant dense<0.000000e+00> : vector<8xf32>
    %39 = vector.multi_reduction <add>, %36, %cst_16 [1] : vector<8x512xf32> to vector<8xf32>
    %40 = vector.shape_cast %39 : vector<8xf32> to vector<8x1xf32>
    %41 = arith.addf %38, %40 : vector<8x1xf32>
    %c0_17 = arith.constant 0 : index
    %c0_18 = arith.constant 0 : index
    %c0_19 = arith.constant 0 : index
    %c0_20 = arith.constant 0 : index
    %42 = vector.load %arg6[%c0_17, %c0_18, %c0_19, %c0_20] : memref<1x1x8x1xf32, #tpu.memory_space<vmem>>, vector<1x1x8x1xf32>
    %43 = vector.shape_cast %42 : vector<1x1x8x1xf32> to vector<8x1xf32>
    %44 = vector.shape_cast %41 : vector<8x1xf32> to vector<1x1x8x1xf32>
    tpu.vector_store %arg6[%c0_17, %c0_18, %c0_19, %c0_20], %44 {strides = array<i32>} : memref<1x1x8x1xf32, #tpu.memory_space<vmem>>, vector<1x1x8x1xf32>,
    return
  }
  func.func @transform_0(%arg0: i32, %arg1: i32, %arg2: i32) -> (i32, i32, i32) {
    %c1_i32 = arith.constant 1 : i32
    %0 = arith.muli %arg1, %c1_i32 : i32
    %1 = arith.addi %0, %arg2 : i32
    %c0_i32 = arith.constant 0 : i32
    %c0_i32_0 = arith.constant 0 : i32
    return %arg0, %c0_i32, %1 : i32, i32, i32
  }
  func.func @transform_1(%arg0: i32, %arg1: i32, %arg2: i32) -> (i32, i32) {
    %c0_i32 = arith.constant 0 : i32
    %c0_i32_0 = arith.constant 0 : i32
    %c0_i32_1 = arith.constant 0 : i32
    return %c0_i32, %c0_i32_0 : i32, i32
  }
  func.func @transform_2(%arg0: i32, %arg1: i32, %arg2: i32) -> (i32, i32) {
    %c0_i32 = arith.constant 0 : i32
    %c0_i32_0 = arith.constant 0 : i32
    %c0_i32_1 = arith.constant 0 : i32
    return %c0_i32, %c0_i32_0 : i32, i32
  }
  func.func @transform_3(%arg0: i32, %arg1: i32, %arg2: i32) -> (i32, i32, i32, i32) {
    %c0_i32 = arith.constant 0 : i32
    %c0_i32_0 = arith.constant 0 : i32
    %c0_i32_1 = arith.constant 0 : i32
    return %arg0, %arg1, %c0_i32, %c0_i32_0 : i32, i32, i32, i32
  }
}

</mosaic_0001>

<llo_original>
// kernel: tpu_custom_call.1
$region0: #{tpu_custom_call.1}
  #allocation0 [shape = 'u32[]', space=smem, size = 0x4, offset = 0x4, fixed_abs, tag = 'smem constant byte address 0x4 - core index']
  #allocation1 [shape = 'u32[144,128]{1,0:T(1,128)}', space=vmem, size = 0x12000, scoped, tag = 'internal scratch']
  %s0 = inlined_call_operand.hbm [shape: f32[2,4,512], index: 0, kind: input, shape index: {}]
  %s1 = inlined_call_operand.vmem [shape: f32[8,4], index: 1, kind: input, shape index: {}]
  %s2 = inlined_call_operand.vmem [shape: f32[8,4], index: 2, kind: input, shape index: {}]
  %s3 = inlined_call_operand.vmem [shape: f32[2,1,8,1], index: 3, kind: output, shape index: {}]
  %s4 = sld [smem:[#allocation0]]
  $region53: #{tpu_custom_call.1} parent=0
    _
  %s6 = ssub.s32 1, %s4
  %s7 = scalar_select 0, %s6, %s4
  $region1: #{tpu_custom_call.1} parent=0
    #allocation2 [shape = 'u8[16384]{0}', space=vmem, size = 0x4000, scoped, tag = 'input window, operand 0']
    #allocation3 [shape = 's32[2]{0}', space=sflag, size = 0x8, scoped, tag = 'scoped memory for tpu_custom_call.1']
    %8 = vsyncpa [#allocation3], 0
    %s9 = scalar_lea.sflag [#allocation3], 1
    %10 = vsyncpa %s9, 0
    loop: start=0, step=1, limit=4
    $region2: #{tpu_custom_call.1} parent=1 // loop_pre_header
      _
    $region3: #{tpu_custom_call.1} parent=1 // loop_header
      %s12 = sphi 0, %s16
      %p13 = scmp.ge.s32.totalorder %s12, 4
      %s19 = sphi 0, %s38
      %s20 = sphi 0, %s34
      %s21 = sphi 0, %s30
      %s22 = sphi 0, %s19
      %s23 = sphi 0, %s20
      %s24 = sphi 0, %s21
      %s25 = sphi 0, %s22
      %s26 = sphi 0, %s23
      %s27 = sphi 0, %s24
      %s45 = sphi 0, %s47
      %s48 = sphi 0, %s45
      %s49 = sphi 0, %s48
      %s65 = sphi 0, %s49
      %s69 = sphi 0, %s69
      %s71 = sphi 0, %s69
      %s72 = sphi 0, %s71
      %s86 = sphi 0, %s72
      %s90 = sphi 0, %s90
      %s92 = sphi 0, %s90
      %s93 = sphi 0, %s92
      %s107 = sphi 0, %s93
      %s115 = sphi 0, %s117
      %s118 = sphi 0, %s115
      %s119 = sphi 0, %s118
      %s135 = sphi 0, %s119
    $region4: #{tpu_custom_call.1} parent=1 // loop_header_branch
      %15 = sbr.rel (%p13) target = $region8
    $region5: #{tpu_custom_call.1} parent=1 // loop_body
      %s17 = ssub.s32 %s12, 1
      %s18 = ssub.s32 %s12, 2
      %s28 = sadd.s32 1, %s21
      %p29 = scmp.ge.s32.totalorder %s28, 1
      %s30 = scalar_select %p29, 0, %s28
      %s31 = sadd.s32 1, %s20
      %s32 = scalar_select %p29, %s31, %s20
      %p33 = scmp.ge.s32.totalorder %s32, 1
      %s34 = scalar_select %p33, 0, %s32
      %s35 = sadd.s32 1, %s19
      %s36 = scalar_select %p33, %s35, %s19
      %p37 = scmp.ge.s32.totalorder %s36, 2
      %s38 = scalar_select %p37, 0, %s36
      %s39 = sadd.s32 %s20, %s21
      %s40 = sadd.s32 %s34, %s30
      %s41 = ssub.s32 %s19, %s38
      %s42 = ssub.s32 %s39, %s40
      %s43 = sor.u32 %s41, %s42
      %p44 = scmp.eq.s32.totalorder %s43, 0
      %s46 = sadd.s32 %s45, 1
      %s47 = scalar_select %p44, %s45, %s46
      %p50 = pneg %p44
      %p51 = scmp.eq.s32.totalorder %s12, 1
      %p52 = por %p50, %p51
      %p53 = scmp.ne.s32.totalorder %s45, %s48
      %p54 = scmp.eq.s32.totalorder %s12, 0
      %p55 = por %p53, %p54
      %p56 = scmp.ne.s32.totalorder %s45, %s48
      %p57 = scmp.eq.s32.totalorder %s17, 1
      %p58 = por %p56, %p57
      %p59 = scmp.ne.s32.totalorder %s48, %s49
      %p60 = scmp.eq.s32.totalorder %s17, 0
      %p61 = por %p59, %p60
      %p62 = scmp.ne.s32.totalorder %s48, %s49
      %p63 = scmp.eq.s32.totalorder %s18, 1
      %p64 = por %p62, %p63
      %p66 = scmp.ne.s32.totalorder %s49, %s65
      %p67 = scmp.eq.s32.totalorder %s18, 0
      %p68 = por %p66, %p67
      %s70 = sadd.s32 %s69, 1
      %p73 = scmp.eq.s32.totalorder %s12, 1
      %p74 = scmp.ne.s32.totalorder %s69, %s71
      %p75 = scmp.eq.s32.totalorder %s12, 0
      %p76 = por %p74, %p75
      %p77 = scmp.ne.s32.totalorder %s69, %s71
      %p78 = scmp.eq.s32.totalorder %s17, 1
      %p79 = por %p77, %p78
      %p80 = scmp.ne.s32.totalorder %s71, %s72
      %p81 = scmp.eq.s32.totalorder %s17, 0
      %p82 = por %p80, %p81
      %p83 = scmp.ne.s32.totalorder %s71, %s72
      %p84 = scmp.eq.s32.totalorder %s18, 1
      %p85 = por %p83, %p84
      %p87 = scmp.ne.s32.totalorder %s72, %s86
      %p88 = scmp.eq.s32.totalorder %s18, 0
      %p89 = por %p87, %p88
      %s91 = sadd.s32 %s90, 1
      %p94 = scmp.eq.s32.totalorder %s12, 1
      %p95 = scmp.ne.s32.totalorder %s90, %s92
      %p96 = scmp.eq.s32.totalorder %s12, 0
      %p97 = por %p95, %p96
      %p98 = scmp.ne.s32.totalorder %s90, %s92
      %p99 = scmp.eq.s32.totalorder %s17, 1
      %p100 = por %p98, %p99
      %p101 = scmp.ne.s32.totalorder %s92, %s93
      %p102 = scmp.eq.s32.totalorder %s17, 0
      %p103 = por %p101, %p102
      %p104 = scmp.ne.s32.totalorder %s92, %s93
      %p105 = scmp.eq.s32.totalorder %s18, 1
      %p106 = por %p104, %p105
      %p108 = scmp.ne.s32.totalorder %s93, %s107
      %p109 = scmp.eq.s32.totalorder %s18, 0
      %p110 = por %p108, %p109
      %s111 = ssub.s32 %s19, %s38
      %s112 = ssub.s32 %s20, %s34
      %s113 = sor.u32 %s111, %s112
      %p114 = scmp.eq.s32.totalorder %s113, 0
      %s116 = sadd.s32 %s115, 1
      %s117 = scalar_select %p114, %s115, %s116
      %p120 = pneg %p114
      %p121 = scmp.eq.s32.totalorder %s12, 1
      %p122 = por %p120, %p121
      %p123 = scmp.ne.s32.totalorder %s115, %s118
      %p124 = scmp.eq.s32.totalorder %s12, 0
      %p125 = por %p123, %p124
      %p126 = scmp.ne.s32.totalorder %s115, %s118
      %p127 = scmp.eq.s32.totalorder %s17, 1
      %p128 = por %p126, %p127
      %p129 = scmp.ne.s32.totalorder %s118, %s119
      %p130 = scmp.eq.s32.totalorder %s17, 0
      %p131 = por %p129, %p130
      %p132 = scmp.ne.s32.totalorder %s118, %s119
      %p133 = scmp.eq.s32.totalorder %s18, 1
      %p134 = por %p132, %p133
      %p136 = scmp.ne.s32.totalorder %s119, %s135
      %p137 = scmp.eq.s32.totalorder %s18, 0
      %p138 = por %p136, %p137
      %p139 = scmp.le.s32.totalorder 1, %s12
      %p140 = scmp.lt.s32.totalorder %s12, 3
      %p141 = pnand %p139, %p140
      %p142 = pneg %p141
      // Predicated region
      $region9: #{tpu_custom_call.1} parent=5 // pred_check
        _
      $region10: #{tpu_custom_call.1} parent=5 // pred_check_branch
        %144 = sbr.rel (%p141) target = $region12
      $region11: #{tpu_custom_call.1} parent=5 // pred_region
        %s145 = ssub.s32 %s12, 1
        // Predicated region
        $region13: #{tpu_custom_call.1} parent=11 // pred_check
          %p146 = pneg %p82
        $region14: #{tpu_custom_call.1} parent=11 // pred_check_branch
          %148 = sbr.rel (%p146) target = $region16
        $region15: #{tpu_custom_call.1} parent=11 // pred_region
          _
        $region16: #{tpu_custom_call.1} parent=11 // pred_fallthru
          _
        // Predicated region
        $region17: #{tpu_custom_call.1} parent=11 // pred_check
          %p149 = pneg %p103
        $region18: #{tpu_custom_call.1} parent=11 // pred_check_branch
          %151 = sbr.rel (%p149) target = $region20
        $region19: #{tpu_custom_call.1} parent=11 // pred_region
          _
        $region20: #{tpu_custom_call.1} parent=11 // pred_fallthru
          _
      $region12: #{tpu_custom_call.1} parent=5 // pred_fallthru
        _
      %p152 = scmp.lt.s32.totalorder %s12, 2
      // Predicated region
      $region21: #{tpu_custom_call.1} parent=5 // pred_check
        %p153 = pneg %p152
      $region22: #{tpu_custom_call.1} parent=5 // pred_check_branch
        %155 = sbr.rel (%p153) target = $region24
      $region23: #{tpu_custom_call.1} parent=5 // pred_region
        // Predicated region
        $region25: #{tpu_custom_call.1} parent=23 // pred_check
          %p156 = pneg %p55
        $region26: #{tpu_custom_call.1} parent=23 // pred_check_branch
          %158 = sbr.rel (%p156) target = $region28
        $region27: #{tpu_custom_call.1} parent=23 // pred_region
          %s159 = sand.u32 %s45, 1
          %s160 = scalar_lea.sflag [#allocation3], %s159
          %s161 = sand.u32 %s45, 1
          %s162 = smul.addr %s161, 16
          %s163 = scalar_lea.vmem [#allocation2], %s162
          %s164 = sadd.s32 %s20, %s21
          %s165 = smul.u32 4, %s164
          %s167 = ssub.s32 256, 256
          %168 = vsyncadd %s160, %s167
          %s169 = smul.addr %s19, 4
          %s170 = sadd.s32 %s165, %s169
          %s171 = smul.addr %s170, 64
          %s172 = scalar_lea.hbm %s0, %s171
          %s174 = sshll.u32 %s163, 4
          %s175 = int_to_ptr.vmem [resolvable:$true] %s174
          %177 = dma.hbm_to_vmem [thread:$0]  %s172, 256, %s175, %s160
        $region28: #{tpu_custom_call.1} parent=23 // pred_fallthru
          _
      $region24: #{tpu_custom_call.1} parent=5 // pred_fallthru
        _
      %p178 = scmp.le.s32.totalorder 1, %s12
      %p179 = scmp.lt.s32.totalorder %s12, 3
      %p180 = pnand %p178, %p179
      %p181 = pneg %p180
      // Predicated region
      $region29: #{tpu_custom_call.1} parent=5 // pred_check
        _
      $region30: #{tpu_custom_call.1} parent=5 // pred_check_branch
        %183 = sbr.rel (%p180) target = $region32
      $region31: #{tpu_custom_call.1} parent=5 // pred_region
        %s184 = ssub.s32 %s12, 1
        %s185 = sand.u32 %s48, 1
        %s186 = scalar_lea.sflag [#allocation3], %s185
        %s187 = sand.u32 %s48, 1
        %s188 = smul.addr %s187, 16
        %s189 = scalar_lea.vmem [#allocation2], %s188
        // Predicated region
        $region33: #{tpu_custom_call.1} parent=31 // pred_check
          %p190 = pneg %p61
        $region34: #{tpu_custom_call.1} parent=31 // pred_check_branch
          %192 = sbr.rel (%p190) target = $region36
        $region35: #{tpu_custom_call.1} parent=31 // pred_region
          %193 = dma.done %s186, 256
        $region36: #{tpu_custom_call.1} parent=31 // pred_fallthru
          _
        %s194 = sand.u32 %s48, 1
        %s195 = scalar_lea.sflag [#allocation3], %s194
        %s196 = sand.u32 %s48, 1
        %s197 = smul.addr %s196, 16
        %s198 = scalar_lea.vmem [#allocation2], %s197
        %p199 = pneg %p61
        %p200 = pneg %p58
        %p201 = pneg %p82
        %p202 = pneg %p79
        %p203 = pneg %p103
        %p204 = pneg %p100
        %p205 = pneg %p131
        %p206 = pneg %p128
        %p207 = scmp.lt.s32.totalorder %s22, 1
        %s208 = scalar_select %p207, %s22, 1
        %p209 = scmp.lt.s32.totalorder %s23, 0
        %s210 = scalar_select %p209, %s23, 0
        %s211 = sadd.s32 %s210, %s208
        %s212 = smul.addr %s211, 8
        %s213 = scalar_lea.vmem %s3, %s212
        %s214 = sadd.s32 %s23, %s24
        %s215 = smul.u32 4, %s214
        %p216 = scmp.lt.s32.totalorder %s22, 1
        %s217 = scalar_select %p216, %s22, 1
        %p218 = scmp.lt.s32.totalorder %s23, 0
        %s219 = scalar_select %p218, %s23, 0
        %s220 = sadd.s32 %s219, %s217
        %s221 = smul.addr %s220, 8
        %s222 = scalar_lea.vmem %s3, %s221
        %p223 = scmp.eq.s32.totalorder %s24, 0
        // Predicated region
        $region37: #{tpu_custom_call.1} parent=31 // pred_check
          %p224 = pneg %p223
        $region38: #{tpu_custom_call.1} parent=31 // pred_check_branch
          %226 = sbr.rel (%p224) target = $region40
        $region39: #{tpu_custom_call.1} parent=31 // pred_region
          %vm227 = vcmask 7168
          %228 = vst.msk [vmem:[%s222] sm:$0xff] %vm227, 0.0
        $region40: #{tpu_custom_call.1} parent=31 // pred_fallthru
          _
        %v229 = vld [vmem:[%s189] sm:$0xff]
        %v230 = vld [vmem:[%s189 + $0x8] sm:$0xff]
        %v231 = vld [vmem:[%s1] sm:$0xff]
        %233 = vset.pattern.permute.xlu0 0
        %234 = vperm.xlu0 %233, %v231
        %v235 = vpop.permute.xlu0 %234
        %v239 = vlaneseq
        %v240 = vshrl.u32 %v239, 7
        %v241 = vsub.s32 0, %v240
        %v242 = vrot.slane %v229, %v241
        %v243 = vlaneseq
        %v244 = vshrl.u32 %v243, 7
        %v245 = vsub.s32 4, %v244
        %v246 = vrot.slane %v229, %v245
        %v247 = vlaneseq
        %v248 = vshrl.u32 %v247, 7
        %v249 = vsub.s32 0, %v248
        %v250 = vrot.slane %v230, %v249
        %v251 = vlaneseq
        %v252 = vshrl.u32 %v251, 7
        %v253 = vsub.s32 4, %v252
        %v254 = vrot.slane %v230, %v253
        %v259 = vlaneseq
        %v260 = vshrl.u32 %v259, 7
        %v261 = vsub.s32 0, %v260
        %v262 = vrot.slane %v242, %v261
        %v263 = vlaneseq
        %v264 = vshrl.u32 %v263, 7
        %v265 = vsub.s32 0, %v264
        %v266 = vrot.slane %v246, %v265
        %v267 = vlaneseq
        %v268 = vshrl.u32 %v267, 7
        %v269 = vsub.s32 0, %v268
        %v270 = vrot.slane %v250, %v269
        %v271 = vlaneseq
        %v272 = vshrl.u32 %v271, 7
        %v273 = vsub.s32 0, %v272
        %v274 = vrot.slane %v254, %v273
        %v275 = vmul.f32 %v235, %v262
        %v276 = vmul.f32 %v235, %v266
        %v277 = vmul.f32 %v235, %v270
        %v278 = vmul.f32 %v235, %v274
        %279 = vset.pattern.permute.xlu0 1
        %280 = vperm.xlu0 %279, %v231
        %v281 = vpop.permute.xlu0 %280
        %v283 = vlaneseq
        %v284 = vshrl.u32 %v283, 7
        %v285 = vsub.s32 1, %v284
        %v286 = vrot.slane %v229, %v285
        %v287 = vlaneseq
        %v288 = vshrl.u32 %v287, 7
        %v289 = vsub.s32 5, %v288
        %v290 = vrot.slane %v229, %v289
        %v291 = vlaneseq
        %v292 = vshrl.u32 %v291, 7
        %v293 = vsub.s32 1, %v292
        %v294 = vrot.slane %v230, %v293
        %v295 = vlaneseq
        %v296 = vshrl.u32 %v295, 7
        %v297 = vsub.s32 5, %v296
        %v298 = vrot.slane %v230, %v297
        %v303 = vlaneseq
        %v304 = vshrl.u32 %v303, 7
        %v305 = vsub.s32 1, %v304
        %v306 = vrot.slane %v286, %v305
        %v307 = vlaneseq
        %v308 = vshrl.u32 %v307, 7
        %v309 = vsub.s32 1, %v308
        %v310 = vrot.slane %v290, %v309
        %v311 = vlaneseq
        %v312 = vshrl.u32 %v311, 7
        %v313 = vsub.s32 1, %v312
        %v314 = vrot.slane %v294, %v313
        %v315 = vlaneseq
        %v316 = vshrl.u32 %v315, 7
        %v317 = vsub.s32 1, %v316
        %v318 = vrot.slane %v298, %v317
        %v319 = vmul.f32 %v281, %v306
        %v320 = vmul.f32 %v281, %v310
        %v321 = vmul.f32 %v281, %v314
        %v322 = vmul.f32 %v281, %v318
        %v323 = vadd.f32 %v275, %v319
        %v324 = vadd.f32 %v276, %v320
        %v325 = vadd.f32 %v277, %v321
        %v326 = vadd.f32 %v278, %v322
        %327 = vset.pattern.permute.xlu0 2
        %328 = vperm.xlu0 %327, %v231
        %v329 = vpop.permute.xlu0 %328
        %v331 = vlaneseq
        %v332 = vshrl.u32 %v331, 7
        %v333 = vsub.s32 2, %v332
        %v334 = vrot.slane %v229, %v333
        %v335 = vlaneseq
        %v336 = vshrl.u32 %v335, 7
        %v337 = vsub.s32 6, %v336
        %v338 = vrot.slane %v229, %v337
        %v339 = vlaneseq
        %v340 = vshrl.u32 %v339, 7
        %v341 = vsub.s32 2, %v340
        %v342 = vrot.slane %v230, %v341
        %v343 = vlaneseq
        %v344 = vshrl.u32 %v343, 7
        %v345 = vsub.s32 6, %v344
        %v346 = vrot.slane %v230, %v345
        %v351 = vlaneseq
        %v352 = vshrl.u32 %v351, 7
        %v353 = vsub.s32 2, %v352
        %v354 = vrot.slane %v334, %v353
        %v355 = vlaneseq
        %v356 = vshrl.u32 %v355, 7
        %v357 = vsub.s32 2, %v356
        %v358 = vrot.slane %v338, %v357
        %v359 = vlaneseq
        %v360 = vshrl.u32 %v359, 7
        %v361 = vsub.s32 2, %v360
        %v362 = vrot.slane %v342, %v361
        %v363 = vlaneseq
        %v364 = vshrl.u32 %v363, 7
        %v365 = vsub.s32 2, %v364
        %v366 = vrot.slane %v346, %v365
        %v367 = vmul.f32 %v329, %v354
        %v368 = vmul.f32 %v329, %v358
        %v369 = vmul.f32 %v329, %v362
        %v370 = vmul.f32 %v329, %v366
        %v371 = vadd.f32 %v323, %v367
        %v372 = vadd.f32 %v324, %v368
        %v373 = vadd.f32 %v325, %v369
        %v374 = vadd.f32 %v326, %v370
        %375 = vset.pattern.permute.xlu0 3
        %376 = vperm.xlu0 %375, %v231
        %v377 = vpop.permute.xlu0 %376
        %v379 = vlaneseq
        %v380 = vshrl.u32 %v379, 7
        %v381 = vsub.s32 3, %v380
        %v382 = vrot.slane %v229, %v381
        %v383 = vlaneseq
        %v384 = vshrl.u32 %v383, 7
        %v385 = vsub.s32 7, %v384
        %v386 = vrot.slane %v229, %v385
        %v387 = vlaneseq
        %v388 = vshrl.u32 %v387, 7
        %v389 = vsub.s32 3, %v388
        %v390 = vrot.slane %v230, %v389
        %v391 = vlaneseq
        %v392 = vshrl.u32 %v391, 7
        %v393 = vsub.s32 7, %v392
        %v394 = vrot.slane %v230, %v393
        %v399 = vlaneseq
        %v400 = vshrl.u32 %v399, 7
        %v401 = vsub.s32 3, %v400
        %v402 = vrot.slane %v382, %v401
        %v403 = vlaneseq
        %v404 = vshrl.u32 %v403, 7
        %v405 = vsub.s32 3, %v404
        %v406 = vrot.slane %v386, %v405
        %v407 = vlaneseq
        %v408 = vshrl.u32 %v407, 7
        %v409 = vsub.s32 3, %v408
        %v410 = vrot.slane %v390, %v409
        %v411 = vlaneseq
        %v412 = vshrl.u32 %v411, 7
        %v413 = vsub.s32 3, %v412
        %v414 = vrot.slane %v394, %v413
        %v415 = vmul.f32 %v377, %v402
        %v416 = vmul.f32 %v377, %v406
        %v417 = vmul.f32 %v377, %v410
        %v418 = vmul.f32 %v377, %v414
        %v419 = vadd.f32 %v371, %v415
        %v420 = vadd.f32 %v372, %v416
        %v421 = vadd.f32 %v373, %v417
        %v422 = vadd.f32 %v374, %v418
        %v423 = vld [vmem:[%s2] sm:$0xff]
        %425 = vset.pattern.permute.xlu0 0
        %426 = vperm.xlu0 %425, %v423
        %v427 = vpop.permute.xlu0 %426
        %v429 = vadd.f32 %v419, %v427
        %v430 = vadd.f32 %v420, %v427
        %v431 = vadd.f32 %v421, %v427
        %v432 = vadd.f32 %v422, %v427
        %vm433 = vcmp.ge.f32.partialorder %v429, 0.0
        %vm434 = vcmp.ge.f32.partialorder %v430, 0.0
        %vm435 = vcmp.ge.f32.partialorder %v431, 0.0
        %vm436 = vcmp.ge.f32.partialorder %v432, 0.0
        %437 = vset.pattern.permute.xlu0 1
        %438 = vperm.xlu0 %437, %v423
        %v439 = vpop.permute.xlu0 %438
        %v441 = vmul.f32 %v439, %v429
        %v442 = vmul.f32 %v439, %v430
        %v443 = vmul.f32 %v439, %v431
        %v444 = vmul.f32 %v439, %v432
        %v445 = vsel %vm433, %v429, %v441
        %v446 = vsel %vm434, %v430, %v442
        %v447 = vsel %vm435, %v431, %v443
        %v448 = vsel %vm436, %v432, %v444
        %v449 = vld [vmem:[%s222] sm:$0xff]
        %v450 = vadd.f32 %v445, %v446
        %v451 = vadd.f32 %v450, %v447
        %v452 = vadd.f32 %v451, %v448
        %453 = vadd.xlane.f32.xlu0 %v452
        %v454 = vpop.xlane.xlu0 %453
        %v455 = vadd.f32 %v449, %v454
        %vm456 = vcmask 7168
        %457 = vst.msk [vmem:[%s222] sm:$0xff] %vm456, %v455
        %p458 = scmp.lt.s32.totalorder %s22, 1
        %s459 = scalar_select %p458, %s22, 1
        %p460 = scmp.lt.s32.totalorder %s23, 0
        %s461 = scalar_select %p460, %s23, 0
        %s462 = sadd.s32 %s461, %s459
        %s463 = smul.addr %s462, 8
        %s464 = scalar_lea.vmem %s3, %s463
        // Predicated region
        $region41: #{tpu_custom_call.1} parent=31 // pred_check
          %p465 = pneg %p128
        $region42: #{tpu_custom_call.1} parent=31 // pred_check_branch
          %467 = sbr.rel (%p465) target = $region44
        $region43: #{tpu_custom_call.1} parent=31 // pred_region
          _
        $region44: #{tpu_custom_call.1} parent=31 // pred_fallthru
          _
      $region32: #{tpu_custom_call.1} parent=5 // pred_fallthru
        _
      %p468 = scmp.le.s32.totalorder 2, %s12
      // Predicated region
      $region45: #{tpu_custom_call.1} parent=5 // pred_check
        %p469 = pneg %p468
      $region46: #{tpu_custom_call.1} parent=5 // pred_check_branch
        %471 = sbr.rel (%p469) target = $region48
      $region47: #{tpu_custom_call.1} parent=5 // pred_region
        %s472 = ssub.s32 %s12, 2
        // Predicated region
        $region49: #{tpu_custom_call.1} parent=47 // pred_check
          %p473 = pneg %p134
        $region50: #{tpu_custom_call.1} parent=47 // pred_check_branch
          %475 = sbr.rel (%p473) target = $region52
        $region51: #{tpu_custom_call.1} parent=47 // pred_region
          %p476 = scmp.lt.s32.totalorder %s25, 1
          %s477 = scalar_select %p476, %s25, 1
          %p478 = scmp.lt.s32.totalorder %s26, 0
          %s479 = scalar_select %p478, %s26, 0
          %s480 = sadd.s32 %s479, %s477
          %s481 = smul.addr %s480, 8
          %s482 = scalar_lea.vmem %s3, %s481
        $region52: #{tpu_custom_call.1} parent=47 // pred_fallthru
          _
      $region48: #{tpu_custom_call.1} parent=5 // pred_fallthru
        _
    $region6: #{tpu_custom_call.1} parent=1 // loop_footer
      %s16 = sadd.s32 1, %s12
    $region7: #{tpu_custom_call.1} parent=1 // loop_footer_branch
      %11 = sbr.rel target = $region3
    $region8: #{tpu_custom_call.1} parent=1 // loop_exit
      _
    %483 = vsyncpa [#allocation3], 1
    %s484 = scalar_lea.sflag [#allocation3], 1
    %485 = vsyncpa %s484, 1

</llo_original>
